<compile_context>
chip_gen: v7x
topology: tpu7x:2x2x1
jax: 0.10.0
libtpu: 0.0.40
codegen_flags: <defaults>
</compile_context>

<pallas_src>
import functools

import jax
import jax.numpy as jnp
from jax.experimental import pallas as pl
from jax.experimental.pallas import tpu as pltpu

HIDDEN = 64                              # per-branch hidden width of the 3x3 conv (module spec)
_VMEM_LIMIT_BYTES = 32 * 1024 * 1024     # scoped-VMEM limit handed to Mosaic (safe on v5e/v6e/v7x)
_VMEM_TILE_BUDGET = 20 * 1024 * 1024     # working-set budget used to size the row tile


# --------------------------------------------------------------------------------------
# Kernel
# --------------------------------------------------------------------------------------
def _make_rpn_kernel(cin, wp, tile_rows):
    """Build the fused kernel for a given (Cin, padded width, rows-per-tile)."""
    n_cols = tile_rows * wp                                   # output columns per tile
    tap_offsets = [dy * wp + dx for dy in range(3) for dx in range(3)]

    def kernel(x_ref, w1_ref, b1_ref, w2_ref, b2_ref, out_ref, patch_ref):
        """x_ref    : (1, Cin, L)          raw padded row-slab, L = (tile_rows+2)*wp + 2
           w1_ref   : (3*HIDDEN, 9*Cin)    fused 3x3 weights (cls|loc|z row blocks)
           b1_ref   : (3*HIDDEN, 1)        fused 3x3 bias (f32)
           w2_ref   : (Cout_pad, 3*HIDDEN) block-diagonal fused 1x1 weights
           b2_ref   : (Cout_pad, 1)        fused 1x1 bias (f32)
           out_ref  : (1, Cout_pad, n_cols)
           patch_ref: (9*Cin, n_cols)      VMEM scratch for the in-kernel im2col
        """
        # In-kernel im2col: 9 shifted on-chip copies of the resident slab (no HBM traffic).
        for t, s in enumerate(tap_offsets):
            patch_ref[t * cin:(t + 1) * cin, :] = x_ref[0, :, s:s + n_cols]
        # Fused 3x3 convs of all three branches: one MXU matmul, K = 9*Cin.
        # (M = 3*HIDDEN = 192 under-fills the 256-row MXU on v6e/v7x by ~25%; accepted.)
        h = jnp.dot(w1_ref[...], patch_ref[...], preferred_element_type=jnp.float32)
        h = jnp.maximum(h + b1_ref[...], 0.0)                 # f32 bias + ReLU epilogue (VPU)
        # Fused 1x1 convs: block-diagonal matmul -> (Cout_pad, n_cols), lane-dense NCHW.
        out = jnp.dot(w2_ref[...], h.astype(w2_ref.dtype),
                      preferred_element_type=jnp.float32) + b2_ref[...]
        out_ref[0] = out.astype(out_ref.dtype)

    return kernel


# --------------------------------------------------------------------------------------
# Parameters (synthetic init matching the PyTorch module's shapes / bias fills)
# --------------------------------------------------------------------------------------
def init_params(key, inplanes, num_classes, hidden=HIDDEN, dtype=jnp.float32):
    ks = jax.random.split(key, 8)

    def conv3x3_w(k):
        bound = 1.0 / jnp.sqrt(9 * inplanes)
        return jax.random.uniform(k, (9, inplanes, hidden), dtype, -bound, bound)

    def conv1x1_w(k, cout):
        bound = 1.0 / jnp.sqrt(hidden)
        return jax.random.uniform(k, (hidden, cout), dtype, -bound, bound)

    b1_bound = 1.0 / jnp.sqrt(9 * inplanes)
    return {
        # cls: first-conv bias keeps its default init, last bias = -2.19
        "cls": dict(w1=conv3x3_w(ks[0]),
                    b1=jax.random.uniform(ks[1], (1, hidden), dtype, -b1_bound, b1_bound),
                    w2=conv1x1_w(ks[2], num_classes),
                    b2=jnp.full((1, num_classes), -2.19, dtype)),
        # loc / z_axis: fill_fc_weights zeroes every Conv2d bias
        "loc": dict(w1=conv3x3_w(ks[3]), b1=jnp.zeros((1, hidden), dtype),
                    w2=conv1x1_w(ks[4], 3), b2=jnp.zeros((1, 3), dtype)),
        "z":   dict(w1=conv3x3_w(ks[5]), b1=jnp.zeros((1, hidden), dtype),
                    w2=conv1x1_w(ks[6], 1), b2=jnp.zeros((1, 1), dtype)),
    }


def _pack_params(params, num_classes, cdt, hidden=HIDDEN):
    """Pack the 12 per-branch tensors into 4 fused, transposed arrays (Cout padded to 8)."""
    cls, loc, z = params["cls"], params["loc"], params["z"]
    cin = cls["w1"].shape[1]
    couts = (num_classes, 3, 1)
    cout_pad = ((sum(couts) + 7) // 8) * 8                      # full-sublane output rows
    # first layer: (3*hidden, 9*cin); column index = tap*cin + channel (matches the kernel)
    w1 = jnp.concatenate(
        [bp["w1"].reshape(9 * cin, hidden).T for bp in (cls, loc, z)], axis=0)
    b1 = jnp.concatenate([bp["b1"] for bp in (cls, loc, z)], axis=-1).T     # (3*hidden, 1)
    # second layer: block-diagonal (cout_pad, 3*hidden); trailing pad rows stay zero
    w2 = jnp.zeros((cout_pad, 3 * hidden), cls["w2"].dtype)
    b2 = jnp.zeros((cout_pad, 1), jnp.float32)
    row = 0
    for i, bp in enumerate((cls, loc, z)):
        w2 = w2.at[row:row + couts[i], i * hidden:(i + 1) * hidden].set(bp["w2"].T)
        b2 = b2.at[row:row + couts[i], 0].set(bp["b2"].reshape(-1).astype(jnp.float32))
        row += couts[i]
    return w1.astype(cdt), b1.astype(jnp.float32), w2.astype(cdt), b2, cout_pad


# --------------------------------------------------------------------------------------
# Tiling: rows-per-tile from an explicit, double-buffering-aware VMEM budget
# --------------------------------------------------------------------------------------
def _pick_tile_rows(h, wp, cin, batch, cdt_size, cout_pad, hidden3=3 * HIDDEN,
                    vmem_budget=_VMEM_TILE_BUDGET):
    fixed = (hidden3 * 9 * cin + cout_pad * hidden3) * cdt_size + (hidden3 + cout_pad) * 4
    per_row = wp * (2 * cin * cdt_size            # x slab, double buffered
                    + 9 * cin * cdt_size          # im2col scratch, single copy
                    + hidden3 * (4 + cdt_size)    # h in f32 + cast copy for 2nd matmul
                    + 2 * cout_pad * 4)           # f32 output tile, double buffered
    tile_rows = max(1, int((vmem_budget - fixed) // per_row))
    tile_rows = min(tile_rows, h)
    n_tiles = -(-h // tile_rows)
    if batch * n_tiles < 2 and h > 1:             # keep both v7x TensorCores / megacore busy
        n_tiles = 2
    tile_rows = -(-h // n_tiles)
    return tile_rows, n_tiles


# --------------------------------------------------------------------------------------
# Forward
# --------------------------------------------------------------------------------------
@functools.partial(jax.jit, static_argnames=("num_classes", "compute_dtype"))
def naive_rpn_head_forward(x_nchw, params, *, num_classes, compute_dtype=jnp.bfloat16):
    """x_nchw: [B, inplanes, H, W] -> (pred_cls [B,num_classes,H,W],
                                        pred_loc [B,3,H,W],
                                        pred_z   [B,1,H,W])   (NCHW, like PyTorch)."""
    B, cin, H, W = x_nchw.shape
    cdt = jnp.dtype(compute_dtype)
    wp = W + 2                                                   # width incl. 1-pixel halo

    w1, b1, w2, b2, cout_pad = _pack_params(params, num_classes, cdt)
    tile_rows, n_tiles = _pick_tile_rows(H, wp, cin, B, cdt.itemsize, cout_pad)
    h_pad = tile_rows * n_tiles
    n_cols = tile_rows * wp                                      # output columns per tile
    slab_len = (tile_rows + 2) * wp + 2                          # input slab incl. 2 halo rows

    # Zero-pad by one pixel (plus bottom rows so H divides into tiles), flatten (H, W).
    xp = jnp.pad(x_nchw.astype(cdt), ((0, 0), (0, 0), (1, h_pad - H + 1), (1, 1)))
    xflat = jnp.pad(xp.reshape(B, cin, (h_pad + 2) * wp), ((0, 0), (0, 0), (0, 2)))
    # Overlapping row slabs: only ~2/tile_rows extra HBM bytes (vs 9x for a full im2col).
    x_tiles = jnp.stack([xflat[:, :, r * n_cols:r * n_cols + slab_len]
                         for r in range(n_tiles)], axis=1)
    x_tiles = x_tiles.reshape(B * n_tiles, cin, slab_len)

    kernel = _make_rpn_kernel(cin, wp, tile_rows)
    out = pl.pallas_call(
        kernel,
        out_shape=jax.ShapeDtypeStruct((B * n_tiles, cout_pad, n_cols), x_nchw.dtype),
        grid=(B * n_tiles,),
        in_specs=[
            pl.BlockSpec((1, cin, slab_len), lambda i: (i, 0, 0)),
            # Constant weights/biases: one resident VMEM copy, not double-buffered.
            pl.BlockSpec(memory_space=pltpu.MemorySpace.VMEM),
            pl.BlockSpec(memory_space=pltpu.MemorySpace.VMEM),
            pl.BlockSpec(memory_space=pltpu.MemorySpace.VMEM),
            pl.BlockSpec(memory_space=pltpu.MemorySpace.VMEM),
        ],
        out_specs=pl.BlockSpec((1, cout_pad, n_cols), lambda i: (i, 0, 0)),
        scratch_shapes=[pltpu.VMEM((9 * cin, n_cols), cdt)],
        compiler_params=pltpu.CompilerParams(
            dimension_semantics=("parallel",),
            vmem_limit_bytes=_VMEM_LIMIT_BYTES),
    )(x_tiles, w1, b1, w2, b2)

    # (B*n_tiles, Cout_pad, tile_rows*wp) -> (B, Cout_pad, H, W); drop pad rows/junk cols.
    out = out.reshape(B, n_tiles, cout_pad, tile_rows, wp)
    out = out.transpose(0, 2, 1, 3, 4).reshape(B, cout_pad, h_pad, wp)[:, :, :H, :W]
    pred_cls = out[:, :num_classes]
    pred_loc = out[:, num_classes:num_classes + 3]
    pred_z = out[:, num_classes + 3:num_classes + 4]
    return pred_cls, pred_loc, pred_z


# --------------------------------------------------------------------------------------
# Pure-JAX reference (lax.conv) for correctness checking
# --------------------------------------------------------------------------------------
def _reference_forward(x_nchw, params, num_classes):
    B, cin, H, W = x_nchw.shape
    x = jnp.transpose(x_nchw, (0, 2, 3, 1))

    def branch(bp):
        w1 = bp["w1"].reshape(3, 3, cin, -1)
        h = jax.lax.conv_general_dilated(
            x, w1, (1, 1), "SAME",
            dimension_numbers=("NHWC", "HWIO", "NHWC")) + bp["b1"].reshape(1, 1, 1, -1)
        h = jnp.maximum(h, 0.0)
        o = jnp.einsum("bhwc,co->bhwo", h, bp["w2"]) + bp["b2"].reshape(1, 1, 1, -1)
        return jnp.transpose(o, (0, 3, 1, 2))

    return branch(params["cls"]), branch(params["loc"]), branch(params["z"])


if __name__ == "__main__":
    B, inplanes, H, W = 2, 4, 16, 16
    num_classes = 2

    key = jax.random.PRNGKey(0)
    k_x, k_p = jax.random.split(key)
    x = jax.random.normal(k_x, (B, inplanes, H, W), jnp.float32)
    params = init_params(k_p, inplanes, num_classes)

    # Default path: bf16 compute with f32 accumulation / epilogue.
    pred_cls, pred_loc, pred_z = naive_rpn_head_forward(x, params, num_classes=num_classes)
    jax.block_until_ready((pred_cls, pred_loc, pred_z))

    assert pred_cls.shape == (B, num_classes, H, W)
    assert pred_loc.shape == (B, 3, H, W)
    assert pred_z.shape == (B, 1, H, W)

    ref_cls, ref_loc, ref_z = _reference_forward(x, params, num_classes)
    for got, ref in ((pred_cls, ref_cls), (pred_loc, ref_loc), (pred_z, ref_z)):
        assert jnp.allclose(got, ref, atol=7e-2, rtol=7e-2), "bf16 path mismatch vs reference"

    # f32 compute path: tight tolerance.
    f_cls, f_loc, f_z = naive_rpn_head_forward(
        x, params, num_classes=num_classes, compute_dtype=jnp.float32)
    jax.block_until_ready((f_cls, f_loc, f_z))
    for got, ref in ((f_cls, ref_cls), (f_loc, ref_loc), (f_z, ref_z)):
        assert jnp.allclose(got, ref, atol=1e-4, rtol=1e-4), "f32 path mismatch vs reference"

    print("KERNEL_OK")
</pallas_src>

<mosaic_0001>
module attributes {stable_mosaic.version = 11 : i64} {
  func.func @kernel(%arg0: i32, %arg1: memref<1x4x326xbf16, #tpu.memory_space<vmem>>, %arg2: memref<192x36xbf16, #tpu.memory_space<vmem>>, %arg3: memref<192x1xf32, #tpu.memory_space<vmem>>, %arg4: memref<8x192xbf16, #tpu.memory_space<vmem>>, %arg5: memref<8x1xf32, #tpu.memory_space<vmem>>, %arg6: memref<1x8x288xf32, #tpu.memory_space<vmem>>, %arg7: memref<36x288xbf16, #tpu.memory_space<vmem>>) attributes {dimension_semantics = [#tpu.dimension_semantics<parallel>], iteration_bounds = array<i64: 2>, scalar_prefetch = 0 : i64, scratch_operands = 1 : i64, tpu.core_type = #tpu.core_type<tc>, window_params = [{transform_indices = @transform_0, window_bounds = array<i64: 1, 4, 326>}, {pipeline_mode = #tpu.pipeline_mode<synchronous>, transform_indices = @transform_1, window_bounds = array<i64: 192, 36>}, {pipeline_mode = #tpu.pipeline_mode<synchronous>, transform_indices = @transform_2, window_bounds = array<i64: 192, 1>}, {pipeline_mode = #tpu.pipeline_mode<synchronous>, transform_indices = @transform_3, window_bounds = array<i64: 8, 192>}, {pipeline_mode = #tpu.pipeline_mode<synchronous>, transform_indices = @transform_4, window_bounds = array<i64: 8, 1>}, {transform_indices = @transform_5, window_bounds = array<i64: 1, 8, 288>}]} {
    %c0 = arith.constant 0 : index
    %c0_0 = arith.constant 0 : index
    %c0_1 = arith.constant 0 : index
    %0 = vector.load %arg1[%c0, %c0_0, %c0_1] : memref<1x4x326xbf16, #tpu.memory_space<vmem>>, vector<1x4x288xbf16>
    %1 = vector.shape_cast %0 : vector<1x4x288xbf16> to vector<4x288xbf16>
    %c0_2 = arith.constant 0 : index
    %c0_3 = arith.constant 0 : index
    %2 = vector.load %arg7[%c0_2, %c0_3] : memref<36x288xbf16, #tpu.memory_space<vmem>>, vector<4x288xbf16>
    tpu.vector_store %arg7[%c0_2, %c0_3], %1 {strides = array<i32>} : memref<36x288xbf16, #tpu.memory_space<vmem>>, vector<4x288xbf16>,
    %c0_4 = arith.constant 0 : index
    %c0_5 = arith.constant 0 : index
    %c1 = arith.constant 1 : index
    %3 = vector.load %arg1[%c0_4, %c0_5, %c1] : memref<1x4x326xbf16, #tpu.memory_space<vmem>>, vector<1x4x288xbf16>
    %4 = vector.shape_cast %3 : vector<1x4x288xbf16> to vector<4x288xbf16>
    %c4 = arith.constant 4 : index
    %c0_6 = arith.constant 0 : index
    %5 = vector.load %arg7[%c4, %c0_6] : memref<36x288xbf16, #tpu.memory_space<vmem>>, vector<4x288xbf16>
    tpu.vector_store %arg7[%c4, %c0_6], %4 {strides = array<i32>} : memref<36x288xbf16, #tpu.memory_space<vmem>>, vector<4x288xbf16>,
    %c0_7 = arith.constant 0 : index
    %c0_8 = arith.constant 0 : index
    %c2 = arith.constant 2 : index
    %6 = vector.load %arg1[%c0_7, %c0_8, %c2] : memref<1x4x326xbf16, #tpu.memory_space<vmem>>, vector<1x4x288xbf16>
    %7 = vector.shape_cast %6 : vector<1x4x288xbf16> to vector<4x288xbf16>
    %c8 = arith.constant 8 : index
    %c0_9 = arith.constant 0 : index
    %8 = vector.load %arg7[%c8, %c0_9] : memref<36x288xbf16, #tpu.memory_space<vmem>>, vector<4x288xbf16>
    tpu.vector_store %arg7[%c8, %c0_9], %7 {strides = array<i32>} : memref<36x288xbf16, #tpu.memory_space<vmem>>, vector<4x288xbf16>,
    %c0_10 = arith.constant 0 : index
    %c0_11 = arith.constant 0 : index
    %c18 = arith.constant 18 : index
    %9 = vector.load %arg1[%c0_10, %c0_11, %c18] : memref<1x4x326xbf16, #tpu.memory_space<vmem>>, vector<1x4x288xbf16>
    %10 = vector.shape_cast %9 : vector<1x4x288xbf16> to vector<4x288xbf16>
    %c12 = arith.constant 12 : index
    %c0_12 = arith.constant 0 : index
    %11 = vector.load %arg7[%c12, %c0_12] : memref<36x288xbf16, #tpu.memory_space<vmem>>, vector<4x288xbf16>
    tpu.vector_store %arg7[%c12, %c0_12], %10 {strides = array<i32>} : memref<36x288xbf16, #tpu.memory_space<vmem>>, vector<4x288xbf16>,
    %c0_13 = arith.constant 0 : index
    %c0_14 = arith.constant 0 : index
    %c19 = arith.constant 19 : index
    %12 = vector.load %arg1[%c0_13, %c0_14, %c19] : memref<1x4x326xbf16, #tpu.memory_space<vmem>>, vector<1x4x288xbf16>
    %13 = vector.shape_cast %12 : vector<1x4x288xbf16> to vector<4x288xbf16>
    %c16 = arith.constant 16 : index
    %c0_15 = arith.constant 0 : index
    %14 = vector.load %arg7[%c16, %c0_15] : memref<36x288xbf16, #tpu.memory_space<vmem>>, vector<4x288xbf16>
    tpu.vector_store %arg7[%c16, %c0_15], %13 {strides = array<i32>} : memref<36x288xbf16, #tpu.memory_space<vmem>>, vector<4x288xbf16>,
    %c0_16 = arith.constant 0 : index
    %c0_17 = arith.constant 0 : index
    %c20 = arith.constant 20 : index
    %15 = vector.load %arg1[%c0_16, %c0_17, %c20] : memref<1x4x326xbf16, #tpu.memory_space<vmem>>, vector<1x4x288xbf16>
    %16 = vector.shape_cast %15 : vector<1x4x288xbf16> to vector<4x288xbf16>
    %c20_18 = arith.constant 20 : index
    %c0_19 = arith.constant 0 : index
    %17 = vector.load %arg7[%c20_18, %c0_19] : memref<36x288xbf16, #tpu.memory_space<vmem>>, vector<4x288xbf16>
    tpu.vector_store %arg7[%c20_18, %c0_19], %16 {strides = array<i32>} : memref<36x288xbf16, #tpu.memory_space<vmem>>, vector<4x288xbf16>,
    %c0_20 = arith.constant 0 : index
    %c0_21 = arith.constant 0 : index
    %c36 = arith.constant 36 : index
    %18 = vector.load %arg1[%c0_20, %c0_21, %c36] : memref<1x4x326xbf16, #tpu.memory_space<vmem>>, vector<1x4x288xbf16>
    %19 = vector.shape_cast %18 : vector<1x4x288xbf16> to vector<4x288xbf16>
    %c24 = arith.constant 24 : index
    %c0_22 = arith.constant 0 : index
    %20 = vector.load %arg7[%c24, %c0_22] : memref<36x288xbf16, #tpu.memory_space<vmem>>, vector<4x288xbf16>
    tpu.vector_store %arg7[%c24, %c0_22], %19 {strides = array<i32>} : memref<36x288xbf16, #tpu.memory_space<vmem>>, vector<4x288xbf16>,
    %c0_23 = arith.constant 0 : index
    %c0_24 = arith.constant 0 : index
    %c37 = arith.constant 37 : index
    %21 = vector.load %arg1[%c0_23, %c0_24, %c37] : memref<1x4x326xbf16, #tpu.memory_space<vmem>>, vector<1x4x288xbf16>
    %22 = vector.shape_cast %21 : vector<1x4x288xbf16> to vector<4x288xbf16>
    %c28 = arith.constant 28 : index
    %c0_25 = arith.constant 0 : index
    %23 = vector.load %arg7[%c28, %c0_25] : memref<36x288xbf16, #tpu.memory_space<vmem>>, vector<4x288xbf16>
    tpu.vector_store %arg7[%c28, %c0_25], %22 {strides = array<i32>} : memref<36x288xbf16, #tpu.memory_space<vmem>>, vector<4x288xbf16>,
    %c0_26 = arith.constant 0 : index
    %c0_27 = arith.constant 0 : index
    %c38 = arith.constant 38 : index
    %24 = vector.load %arg1[%c0_26, %c0_27, %c38] : memref<1x4x326xbf16, #tpu.memory_space<vmem>>, vector<1x4x288xbf16>
    %25 = vector.shape_cast %24 : vector<1x4x288xbf16> to vector<4x288xbf16>
    %c32 = arith.constant 32 : index
    %c0_28 = arith.constant 0 : index
    %26 = vector.load %arg7[%c32, %c0_28] : memref<36x288xbf16, #tpu.memory_space<vmem>>, vector<4x288xbf16>
    tpu.vector_store %arg7[%c32, %c0_28], %25 {strides = array<i32>} : memref<36x288xbf16, #tpu.memory_space<vmem>>, vector<4x288xbf16>,
    %c0_29 = arith.constant 0 : index
    %c0_30 = arith.constant 0 : index
    %27 = vector.load %arg2[%c0_29, %c0_30] : memref<192x36xbf16, #tpu.memory_space<vmem>>, vector<192x36xbf16>
    %c0_31 = arith.constant 0 : index
    %c0_32 = arith.constant 0 : index
    %28 = vector.load %arg7[%c0_31, %c0_32] : memref<36x288xbf16, #tpu.memory_space<vmem>>, vector<36x288xbf16>
    %cst = arith.constant dense<0.000000e+00> : vector<192x288xf32>
    %29 = tpu.matmul %27, %28, %cst {dimension_numbers = #tpu.dot_dimension_numbers<[1], [0], [0], [1], [0, 0, 1, 1], [], []>} : vector<192x36xbf16>, vector<36x288xbf16>, vector<192x288xf32> -> vector<192x288xf32>
    %c0_33 = arith.constant 0 : index
    %c0_34 = arith.constant 0 : index
    %30 = vector.load %arg3[%c0_33, %c0_34] : memref<192x1xf32, #tpu.memory_space<vmem>>, vector<192x1xf32>
    %31 = vector.broadcast %30 : vector<192x1xf32> to vector<192x288xf32>
    %32 = arith.addf %29, %31 : vector<192x288xf32>
    %cst_35 = arith.constant 0.000000e+00 : f32
    %33 = vector.broadcast %cst_35 : f32 to vector<192x288xf32>
    %34 = arith.maximumf %32, %33 : vector<192x288xf32>
    %c0_36 = arith.constant 0 : index
    %c0_37 = arith.constant 0 : index
    %35 = vector.load %arg4[%c0_36, %c0_37] : memref<8x192xbf16, #tpu.memory_space<vmem>>, vector<8x192xbf16>
    %36 = arith.truncf %34 : vector<192x288xf32> to vector<192x288xbf16>
    %cst_38 = arith.constant dense<0.000000e+00> : vector<8x288xf32>
    %37 = tpu.matmul %35, %36, %cst_38 {dimension_numbers = #tpu.dot_dimension_numbers<[1], [0], [0], [1], [0, 0, 1, 1], [], []>} : vector<8x192xbf16>, vector<192x288xbf16>, vector<8x288xf32> -> vector<8x288xf32>
    %c0_39 = arith.constant 0 : index
    %c0_40 = arith.constant 0 : index
    %38 = vector.load %arg5[%c0_39, %c0_40] : memref<8x1xf32, #tpu.memory_space<vmem>>, vector<8x1xf32>
    %39 = vector.broadcast %38 : vector<8x1xf32> to vector<8x288xf32>
    %40 = arith.addf %37, %39 : vector<8x288xf32>
    %c0_41 = arith.constant 0 : index
    %c0_42 = arith.constant 0 : index
    %c0_43 = arith.constant 0 : index
    %41 = vector.load %arg6[%c0_41, %c0_42, %c0_43] : memref<1x8x288xf32, #tpu.memory_space<vmem>>, vector<1x8x288xf32>
    %42 = vector.shape_cast %41 : vector<1x8x288xf32> to vector<8x288xf32>
    %43 = vector.shape_cast %40 : vector<8x288xf32> to vector<1x8x288xf32>
    tpu.vector_store %arg6[%c0_41, %c0_42, %c0_43], %43 {strides = array<i32>} : memref<1x8x288xf32, #tpu.memory_space<vmem>>, vector<1x8x288xf32>,
    return
  }
  func.func @transform_0(%arg0: i32) -> (i32, i32, i32) {
    %c0_i32 = arith.constant 0 : i32
    %c0_i32_0 = arith.constant 0 : i32
    %c0_i32_1 = arith.constant 0 : i32
    return %arg0, %c0_i32, %c0_i32_0 : i32, i32, i32
  }
  func.func @transform_1(%arg0: i32) -> (i32, i32) {
    %c0_i32 = arith.constant 0 : i32
    %c0_i32_0 = arith.constant 0 : i32
    %c0_i32_1 = arith.constant 0 : i32
    return %c0_i32, %c0_i32_0 : i32, i32
  }
  func.func @transform_2(%arg0: i32) -> (i32, i32) {
    %c0_i32 = arith.constant 0 : i32
    %c0_i32_0 = arith.constant 0 : i32
    %c0_i32_1 = arith.constant 0 : i32
    return %c0_i32, %c0_i32_0 : i32, i32
  }
  func.func @transform_3(%arg0: i32) -> (i32, i32) {
    %c0_i32 = arith.constant 0 : i32
    %c0_i32_0 = arith.constant 0 : i32
    %c0_i32_1 = arith.constant 0 : i32
    return %c0_i32, %c0_i32_0 : i32, i32
  }
  func.func @transform_4(%arg0: i32) -> (i32, i32) {
    %c0_i32 = arith.constant 0 : i32
    %c0_i32_0 = arith.constant 0 : i32
    %c0_i32_1 = arith.constant 0 : i32
    return %c0_i32, %c0_i32_0 : i32, i32
  }
  func.func @transform_5(%arg0: i32) -> (i32, i32, i32) {
    %c0_i32 = arith.constant 0 : i32
    %c0_i32_0 = arith.constant 0 : i32
    %c0_i32_1 = arith.constant 0 : i32
    return %arg0, %c0_i32, %c0_i32_0 : i32, i32, i32
  }
}

</mosaic_0001>

<llo_original>
// kernel: naive_rpn_head_forward.1
$region0: #{naive_rpn_head_forward.1}
  #allocation0 [shape = 'u32[]', space=smem, size = 0x4, offset = 0x4, fixed_abs, tag = 'smem constant byte address 0x4 - core index']
  #allocation1 [shape = 'u32[144,128]{1,0:T(1,128)}', space=vmem, size = 0x12000, scoped, tag = 'internal scratch']
  #allocation2 [shape = 'bf16[36,288]{1,0:T(8,128)(2,1)}', space=vmem, size = 0x7800, scoped, tag = 'scratch operand']
  %s0 = inlined_call_operand.vmem [shape: bf16[2,4,326], index: 0, kind: input, shape index: {}]
  %s1 = inlined_call_operand.vmem [shape: bf16[192,36], index: 1, kind: input, shape index: {}]
  %s2 = inlined_call_operand.vmem [shape: f32[192,1], index: 2, kind: input, shape index: {}]
  %s3 = inlined_call_operand.vmem [shape: bf16[8,192], index: 3, kind: input, shape index: {}]
  %s4 = inlined_call_operand.vmem [shape: f32[8,1], index: 4, kind: input, shape index: {}]
  %s5 = inlined_call_operand.vmem [shape: f32[2,8,288], index: 5, kind: output, shape index: {}]
  %s6 = sld [smem:[#allocation0]]
  $region53: #{naive_rpn_head_forward.1} parent=0
    _
  %s8 = ssub.s32 1, %s6
  %s9 = scalar_select 0, %s8, %s6
  loop: start=0, step=1, limit=4
  $region2: #{naive_rpn_head_forward.1} parent=0 // loop_pre_header
    _
  $region3: #{naive_rpn_head_forward.1} parent=0 // loop_header
    %s11 = sphi 0, %s15
    %p12 = scmp.ge.s32.totalorder %s11, 4
    %s21 = sphi 0, %s23
    %s24 = sphi 0, %s21
    %s25 = sphi 0, %s24
    %s41 = sphi 0, %s25
    %s45 = sphi 0, %s45
    %s47 = sphi 0, %s45
    %s48 = sphi 0, %s47
    %s62 = sphi 0, %s48
    %s66 = sphi 0, %s66
    %s68 = sphi 0, %s66
    %s69 = sphi 0, %s68
    %s83 = sphi 0, %s69
    %s87 = sphi 0, %s87
    %s89 = sphi 0, %s87
    %s90 = sphi 0, %s89
    %s104 = sphi 0, %s90
    %s108 = sphi 0, %s108
    %s110 = sphi 0, %s108
    %s111 = sphi 0, %s110
    %s125 = sphi 0, %s111
    %s131 = sphi 0, %s133
    %s134 = sphi 0, %s131
    %s135 = sphi 0, %s134
    %s151 = sphi 0, %s135
  $region4: #{naive_rpn_head_forward.1} parent=0 // loop_header_branch
    %14 = sbr.rel (%p12) target = $region8
  $region5: #{naive_rpn_head_forward.1} parent=0 // loop_body
    %s16 = ssub.s32 %s11, 1
    %s17 = ssub.s32 %s11, 2
    %s18 = sadd.s32 %s11, 1
    %s19 = ssub.s32 %s11, %s18
    %p20 = scmp.eq.s32.totalorder %s19, 0
    %s22 = sadd.s32 %s21, 1
    %s23 = scalar_select %p20, %s21, %s22
    %p26 = pneg %p20
    %p27 = scmp.eq.s32.totalorder %s11, 1
    %p28 = por %p26, %p27
    %p29 = scmp.ne.s32.totalorder %s21, %s24
    %p30 = scmp.eq.s32.totalorder %s11, 0
    %p31 = por %p29, %p30
    %p32 = scmp.ne.s32.totalorder %s21, %s24
    %p33 = scmp.eq.s32.totalorder %s16, 1
    %p34 = por %p32, %p33
    %p35 = scmp.ne.s32.totalorder %s24, %s25
    %p36 = scmp.eq.s32.totalorder %s16, 0
    %p37 = por %p35, %p36
    %p38 = scmp.ne.s32.totalorder %s24, %s25
    %p39 = scmp.eq.s32.totalorder %s17, 1
    %p40 = por %p38, %p39
    %p42 = scmp.ne.s32.totalorder %s25, %s41
    %p43 = scmp.eq.s32.totalorder %s17, 0
    %p44 = por %p42, %p43
    %s46 = sadd.s32 %s45, 1
    %p49 = scmp.eq.s32.totalorder %s11, 1
    %p50 = scmp.ne.s32.totalorder %s45, %s47
    %p51 = scmp.eq.s32.totalorder %s11, 0
    %p52 = por %p50, %p51
    %p53 = scmp.ne.s32.totalorder %s45, %s47
    %p54 = scmp.eq.s32.totalorder %s16, 1
    %p55 = por %p53, %p54
    %p56 = scmp.ne.s32.totalorder %s47, %s48
    %p57 = scmp.eq.s32.totalorder %s16, 0
    %p58 = por %p56, %p57
    %p59 = scmp.ne.s32.totalorder %s47, %s48
    %p60 = scmp.eq.s32.totalorder %s17, 1
    %p61 = por %p59, %p60
    %p63 = scmp.ne.s32.totalorder %s48, %s62
    %p64 = scmp.eq.s32.totalorder %s17, 0
    %p65 = por %p63, %p64
    %s67 = sadd.s32 %s66, 1
    %p70 = scmp.eq.s32.totalorder %s11, 1
    %p71 = scmp.ne.s32.totalorder %s66, %s68
    %p72 = scmp.eq.s32.totalorder %s11, 0
    %p73 = por %p71, %p72
    %p74 = scmp.ne.s32.totalorder %s66, %s68
    %p75 = scmp.eq.s32.totalorder %s16, 1
    %p76 = por %p74, %p75
    %p77 = scmp.ne.s32.totalorder %s68, %s69
    %p78 = scmp.eq.s32.totalorder %s16, 0
    %p79 = por %p77, %p78
    %p80 = scmp.ne.s32.totalorder %s68, %s69
    %p81 = scmp.eq.s32.totalorder %s17, 1
    %p82 = por %p80, %p81
    %p84 = scmp.ne.s32.totalorder %s69, %s83
    %p85 = scmp.eq.s32.totalorder %s17, 0
    %p86 = por %p84, %p85
    %s88 = sadd.s32 %s87, 1
    %p91 = scmp.eq.s32.totalorder %s11, 1
    %p92 = scmp.ne.s32.totalorder %s87, %s89
    %p93 = scmp.eq.s32.totalorder %s11, 0
    %p94 = por %p92, %p93
    %p95 = scmp.ne.s32.totalorder %s87, %s89
    %p96 = scmp.eq.s32.totalorder %s16, 1
    %p97 = por %p95, %p96
    %p98 = scmp.ne.s32.totalorder %s89, %s90
    %p99 = scmp.eq.s32.totalorder %s16, 0
    %p100 = por %p98, %p99
    %p101 = scmp.ne.s32.totalorder %s89, %s90
    %p102 = scmp.eq.s32.totalorder %s17, 1
    %p103 = por %p101, %p102
    %p105 = scmp.ne.s32.totalorder %s90, %s104
    %p106 = scmp.eq.s32.totalorder %s17, 0
    %p107 = por %p105, %p106
    %s109 = sadd.s32 %s108, 1
    %p112 = scmp.eq.s32.totalorder %s11, 1
    %p113 = scmp.ne.s32.totalorder %s108, %s110
    %p114 = scmp.eq.s32.totalorder %s11, 0
    %p115 = por %p113, %p114
    %p116 = scmp.ne.s32.totalorder %s108, %s110
    %p117 = scmp.eq.s32.totalorder %s16, 1
    %p118 = por %p116, %p117
    %p119 = scmp.ne.s32.totalorder %s110, %s111
    %p120 = scmp.eq.s32.totalorder %s16, 0
    %p121 = por %p119, %p120
    %p122 = scmp.ne.s32.totalorder %s110, %s111
    %p123 = scmp.eq.s32.totalorder %s17, 1
    %p124 = por %p122, %p123
    %p126 = scmp.ne.s32.totalorder %s111, %s125
    %p127 = scmp.eq.s32.totalorder %s17, 0
    %p128 = por %p126, %p127
    %s129 = ssub.s32 %s11, %s18
    %p130 = scmp.eq.s32.totalorder %s129, 0
    %s132 = sadd.s32 %s131, 1
    %s133 = scalar_select %p130, %s131, %s132
    %p136 = pneg %p130
    %p137 = scmp.eq.s32.totalorder %s11, 1
    %p138 = por %p136, %p137
    %p139 = scmp.ne.s32.totalorder %s131, %s134
    %p140 = scmp.eq.s32.totalorder %s11, 0
    %p141 = por %p139, %p140
    %p142 = scmp.ne.s32.totalorder %s131, %s134
    %p143 = scmp.eq.s32.totalorder %s16, 1
    %p144 = por %p142, %p143
    %p145 = scmp.ne.s32.totalorder %s134, %s135
    %p146 = scmp.eq.s32.totalorder %s16, 0
    %p147 = por %p145, %p146
    %p148 = scmp.ne.s32.totalorder %s134, %s135
    %p149 = scmp.eq.s32.totalorder %s17, 1
    %p150 = por %p148, %p149
    %p152 = scmp.ne.s32.totalorder %s135, %s151
    %p153 = scmp.eq.s32.totalorder %s17, 0
    %p154 = por %p152, %p153
    %p155 = scmp.le.s32.totalorder 1, %s11
    %p156 = scmp.lt.s32.totalorder %s11, 3
    %p157 = pnand %p155, %p156
    %p158 = pneg %p157
    // Predicated region
    $region9: #{naive_rpn_head_forward.1} parent=5 // pred_check
      _
    $region10: #{naive_rpn_head_forward.1} parent=5 // pred_check_branch
      %160 = sbr.rel (%p157) target = $region12
    $region11: #{naive_rpn_head_forward.1} parent=5 // pred_region
      %s161 = ssub.s32 %s11, 1
      // Predicated region
      $region13: #{naive_rpn_head_forward.1} parent=11 // pred_check
        %p162 = pneg %p58
      $region14: #{naive_rpn_head_forward.1} parent=11 // pred_check_branch
        %164 = sbr.rel (%p162) target = $region16
      $region15: #{naive_rpn_head_forward.1} parent=11 // pred_region
        _
      $region16: #{naive_rpn_head_forward.1} parent=11 // pred_fallthru
        _
      // Predicated region
      $region17: #{naive_rpn_head_forward.1} parent=11 // pred_check
        %p165 = pneg %p79
      $region18: #{naive_rpn_head_forward.1} parent=11 // pred_check_branch
        %167 = sbr.rel (%p165) target = $region20
      $region19: #{naive_rpn_head_forward.1} parent=11 // pred_region
        _
      $region20: #{naive_rpn_head_forward.1} parent=11 // pred_fallthru
        _
      // Predicated region
      $region21: #{naive_rpn_head_forward.1} parent=11 // pred_check
        %p168 = pneg %p100
      $region22: #{naive_rpn_head_forward.1} parent=11 // pred_check_branch
        %170 = sbr.rel (%p168) target = $region24
      $region23: #{naive_rpn_head_forward.1} parent=11 // pred_region
        _
      $region24: #{naive_rpn_head_forward.1} parent=11 // pred_fallthru
        _
      // Predicated region
      $region25: #{naive_rpn_head_forward.1} parent=11 // pred_check
        %p171 = pneg %p121
      $region26: #{naive_rpn_head_forward.1} parent=11 // pred_check_branch
        %173 = sbr.rel (%p171) target = $region28
      $region27: #{naive_rpn_head_forward.1} parent=11 // pred_region
        _
      $region28: #{naive_rpn_head_forward.1} parent=11 // pred_fallthru
        _
    $region12: #{naive_rpn_head_forward.1} parent=5 // pred_fallthru
      _
    %p174 = scmp.lt.s32.totalorder %s11, 2
    // Predicated region
    $region29: #{naive_rpn_head_forward.1} parent=5 // pred_check
      %p175 = pneg %p174
    $region30: #{naive_rpn_head_forward.1} parent=5 // pred_check_branch
      %177 = sbr.rel (%p175) target = $region32
    $region31: #{naive_rpn_head_forward.1} parent=5 // pred_region
      // Predicated region
      $region33: #{naive_rpn_head_forward.1} parent=31 // pred_check
        %p178 = pneg %p31
      $region34: #{naive_rpn_head_forward.1} parent=31 // pred_check_branch
        %180 = sbr.rel (%p178) target = $region36
      $region35: #{naive_rpn_head_forward.1} parent=31 // pred_region
        %p181 = scmp.lt.s32.totalorder %s11, 1
        %s182 = scalar_select %p181, %s11, 1
        %s183 = smul.addr %s182, 3
        %s184 = smul.addr %s183, 2
        %s185 = scalar_lea.vmem %s0, %s184
      $region36: #{naive_rpn_head_forward.1} parent=31 // pred_fallthru
        _
    $region32: #{naive_rpn_head_forward.1} parent=5 // pred_fallthru
      _
    %p186 = scmp.le.s32.totalorder 1, %s11
    %p187 = scmp.lt.s32.totalorder %s11, 3
    %p188 = pnand %p186, %p187
    %p189 = pneg %p188
    // Predicated region
    $region37: #{naive_rpn_head_forward.1} parent=5 // pred_check
      _
    $region38: #{naive_rpn_head_forward.1} parent=5 // pred_check_branch
      %191 = sbr.rel (%p188) target = $region40
    $region39: #{naive_rpn_head_forward.1} parent=5 // pred_region
      %s192 = ssub.s32 %s11, 1
      %p193 = scmp.lt.s32.totalorder %s16, 1
      %s194 = scalar_select %p193, %s16, 1
      %s195 = smul.addr %s194, 3
      %s196 = smul.addr %s195, 2
      %s197 = scalar_lea.vmem %s0, %s196
      %p198 = pneg %p37
      %p199 = pneg %p34
      %p200 = pneg %p58
      %p201 = pneg %p55
      %p202 = pneg %p79
      %p203 = pneg %p76
      %p204 = pneg %p100
      %p205 = pneg %p97
      %p206 = pneg %p121
      %p207 = pneg %p118
      %p208 = pneg %p147
      %p209 = pneg %p144
      %p210 = scmp.lt.s32.totalorder %s16, 1
      %s211 = scalar_select %p210, %s16, 1
      %s212 = smul.addr %s211, 3
      %s213 = smul.addr %s212, 8
      %s214 = scalar_lea.vmem %s5, %s213
      %p215 = scmp.lt.s32.totalorder %s16, 1
      %s216 = scalar_select %p215, %s16, 1
      %s217 = smul.addr %s216, 3
      %s218 = smul.addr %s217, 2
      %s219 = scalar_lea.vmem %s0, %s218
      %p220 = scmp.lt.s32.totalorder %s16, 1
      %s221 = scalar_select %p220, %s16, 1
      %s222 = smul.addr %s221, 3
      %s223 = smul.addr %s222, 8
      %s224 = scalar_lea.vmem %s5, %s223
      %v226 = vld [vmem:[%s219] sm:$0x3f]
      %v228 = vcombine.high %v226, %v226
      %v230 = vunpack.c.l.s4 1983009808
      %v231 = vunpack.c.0.s8 %v230
      %v232 = vlaneseq
      %v233 = vshrl.u32 %v232, 7
      %v234 = vsub.s32 %v231, %v233
      %v235 = vrot.slane %v226, %v234
      %v237 = vunpack.c.l.s4 1983009808
      %v238 = vunpack.c.0.s8 %v237
      %v239 = vlaneseq
      %v240 = vshrl.u32 %v239, 7
      %v241 = vsub.s32 %v238, %v240
      %v242 = vrot.slane %v228, %v241
      %245 = vst [vmem:[#allocation2] sm:$0x33] %v235
      %vm246 = vcmask 254976
      %247 = vst.msk [vmem:[#allocation2 + $0x8] sm:$0x3] %vm246, %v242
      %v248 = vld [vmem:[%s219] sm:$0x3f]
      %v250 = vcombine.low %v248, %v248
      %v252 = vunpack.c.l.s4 1983009808
      %v253 = vunpack.c.0.s8 %v252
      %v254 = vlaneseq
      %v255 = vshrl.u32 %v254, 7
      %v256 = vsub.s32 %v253, %v255
      %v257 = vrot.slane %v250, %v256
      %v259 = vunpack.c.l.s4 1983009808
      %v260 = vunpack.c.0.s8 %v259
      %v261 = vlaneseq
      %v262 = vshrl.u32 %v261, 7
      %v263 = vsub.s32 %v260, %v262
      %v264 = vrot.slane %v248, %v263
      %265 = vrot.lane.b32.xlu0 %v257, 127
      %v266 = vpop.permute.xlu0 %265
      %267 = vrot.lane.b32.xlu0 %v264, 127
      %v268 = vpop.permute.xlu0 %267
      %v269 = vrot.slane %v266, 4
      %v270 = vrot.slane %v268, 4
      %vm271 = vcmask 1043456
      %v272 = vsel %vm271, %v269, %v270
      %vm273 = vcmask 1039360
      %v274 = vsel %vm273, %v266, %v272
      %277 = vst [vmem:[#allocation2] sm:$0xcc] %v274
      %vm278 = vcmask 257026
      %279 = vst.msk [vmem:[#allocation2 + $0x8] sm:$0xc] %vm278, %v268
      %v280 = vld [vmem:[%s219] sm:$0x3f]
      %v282 = vcombine.high %v280, %v280
      %v284 = vunpack.c.l.s4 1983009808
      %v285 = vunpack.c.0.s8 %v284
      %v286 = vlaneseq
      %v287 = vshrl.u32 %v286, 7
      %v288 = vsub.s32 %v285, %v287
      %v289 = vrot.slane %v280, %v288
      %v291 = vunpack.c.l.s4 1983009808
      %v292 = vunpack.c.0.s8 %v291
      %v293 = vlaneseq
      %v294 = vshrl.u32 %v293, 7
      %v295 = vsub.s32 %v292, %v294
      %v296 = vrot.slane %v282, %v295
      %297 = vrot.lane.b32.xlu0 %v289, 126
      %v298 = vpop.permute.xlu0 %297
      %299 = vrot.lane.b32.xlu0 %v296, 126
      %v300 = vpop.permute.xlu0 %299
      %v301 = vrot.slane %v298, 4
      %v302 = vrot.slane %v300, 4
      %v303 = vsel %vm271, %v301, %v302
      %vm304 = vcmask 1031168
      %v305 = vsel %vm304, %v298, %v303
      %308 = vst [vmem:[#allocation2 + $0xc] sm:$0x33] %v305
      %309 = vst.msk [vmem:[#allocation2 + $0x14] sm:$0x3] %vm246, %v300
      %v310 = vld [vmem:[%s219] sm:$0x3f]
      %v312 = vcombine.low %v310, %v310
      %v314 = vunpack.c.l.s4 1983009808
      %v315 = vunpack.c.0.s8 %v314
      %v316 = vlaneseq
      %v317 = vshrl.u32 %v316, 7
      %v318 = vsub.s32 %v315, %v317
      %v319 = vrot.slane %v312, %v318
      %v321 = vunpack.c.l.s4 1983009808
      %v322 = vunpack.c.0.s8 %v321
      %v323 = vlaneseq
      %v324 = vshrl.u32 %v323, 7
      %v325 = vsub.s32 %v322, %v324
      %v326 = vrot.slane %v310, %v325
      %327 = vrot.lane.b32.xlu0 %v319, 110
      %v328 = vpop.permute.xlu0 %327
      %329 = vrot.lane.b32.xlu0 %v326, 110
      %v330 = vpop.permute.xlu0 %329
      %v331 = vrot.slane %v328, 4
      %v332 = vrot.slane %v330, 4
      %v333 = vsel %vm271, %v331, %v332
      %vm334 = vcmask 900096
      %v335 = vsel %vm334, %v328, %v333
      %338 = vst [vmem:[#allocation2 + $0xc] sm:$0xcc] %v335
      %339 = vst.msk [vmem:[#allocation2 + $0x14] sm:$0xc] %vm278, %v330
      %v340 = vld [vmem:[%s219] sm:$0x3f]
      %v342 = vcombine.high %v340, %v340
      %v344 = vunpack.c.l.s4 1983009808
      %v345 = vunpack.c.0.s8 %v344
      %v346 = vlaneseq
      %v347 = vshrl.u32 %v346, 7
      %v348 = vsub.s32 %v345, %v347
      %v349 = vrot.slane %v340, %v348
      %v351 = vunpack.c.l.s4 1983009808
      %v352 = vunpack.c.0.s8 %v351
      %v353 = vlaneseq
      %v354 = vshrl.u32 %v353, 7
      %v355 = vsub.s32 %v352, %v354
      %v356 = vrot.slane %v342, %v355
      %357 = vrot.lane.b32.xlu0 %v349, 109
      %v358 = vpop.permute.xlu0 %357
      %359 = vrot.lane.b32.xlu0 %v356, 109
      %v360 = vpop.permute.xlu0 %359
      %v361 = vrot.slane %v358, 4
      %v362 = vrot.slane %v360, 4
      %v363 = vsel %vm271, %v361, %v362
      %vm364 = vcmask 891904
      %v365 = vsel %vm364, %v358, %v363
      %368 = vst [vmem:[#allocation2 + $0x18] sm:$0x33] %v365
      %369 = vst.msk [vmem:[#allocation2 + $0x20] sm:$0x3] %vm246, %v360
      %v370 = vld [vmem:[%s219] sm:$0x3f]
      %v372 = vcombine.low %v370, %v370
      %v374 = vunpack.c.l.s4 1983009808
      %v375 = vunpack.c.0.s8 %v374
      %v376 = vlaneseq
      %v377 = vshrl.u32 %v376, 7
      %v378 = vsub.s32 %v375, %v377
      %v379 = vrot.slane %v372, %v378
      %v381 = vunpack.c.l.s4 1983009808
      %v382 = vunpack.c.0.s8 %v381
      %v383 = vlaneseq
      %v384 = vshrl.u32 %v383, 7
      %v385 = vsub.s32 %v382, %v384
      %v386 = vrot.slane %v370, %v385
      %387 = vrot.lane.b32.xlu0 %v379, 108
      %v388 = vpop.permute.xlu0 %387
      %389 = vrot.lane.b32.xlu0 %v386, 108
      %v390 = vpop.permute.xlu0 %389
      %v391 = vrot.slane %v388, 4
      %v392 = vrot.slane %v390, 4
      %v393 = vsel %vm271, %v391, %v392
      %vm394 = vcmask 883712
      %v395 = vsel %vm394, %v388, %v393
      %398 = vst [vmem:[#allocation2 + $0x18] sm:$0xcc] %v395
      %399 = vst.msk [vmem:[#allocation2 + $0x20] sm:$0xc] %vm278, %v390
      %v400 = vld [vmem:[%s219] sm:$0x3f]
      %v402 = vcombine.high %v400, %v400
      %v404 = vunpack.c.l.s4 1983009808
      %v405 = vunpack.c.0.s8 %v404
      %v406 = vlaneseq
      %v407 = vshrl.u32 %v406, 7
      %v408 = vsub.s32 %v405, %v407
      %v409 = vrot.slane %v400, %v408
      %v411 = vunpack.c.l.s4 1983009808
      %v412 = vunpack.c.0.s8 %v411
      %v413 = vlaneseq
      %v414 = vshrl.u32 %v413, 7
      %v415 = vsub.s32 %v412, %v414
      %v416 = vrot.slane %v402, %v415
      %417 = vrot.lane.b32.xlu0 %v409, 92
      %v418 = vpop.permute.xlu0 %417
      %419 = vrot.lane.b32.xlu0 %v416, 92
      %v420 = vpop.permute.xlu0 %419
      %v421 = vrot.slane %v418, 4
      %v422 = vrot.slane %v420, 4
      %v423 = vsel %vm271, %v421, %v422
      %vm424 = vcmask 752640
      %v425 = vsel %vm424, %v418, %v423
      %428 = vst [vmem:[#allocation2 + $0x24] sm:$0x33] %v425
      %429 = vst.msk [vmem:[#allocation2 + $0x2c] sm:$0x3] %vm246, %v420
      %v430 = vld [vmem:[%s219] sm:$0x3f]
      %v432 = vcombine.low %v430, %v430
      %v434 = vunpack.c.l.s4 1983009808
      %v435 = vunpack.c.0.s8 %v434
      %v436 = vlaneseq
      %v437 = vshrl.u32 %v436, 7
      %v438 = vsub.s32 %v435, %v437
      %v439 = vrot.slane %v432, %v438
      %v441 = vunpack.c.l.s4 1983009808
      %v442 = vunpack.c.0.s8 %v441
      %v443 = vlaneseq
      %v444 = vshrl.u32 %v443, 7
      %v445 = vsub.s32 %v442, %v444
      %v446 = vrot.slane %v430, %v445
      %447 = vrot.lane.b32.xlu0 %v439, 91
      %v448 = vpop.permute.xlu0 %447
      %449 = vrot.lane.b32.xlu0 %v446, 91
      %v450 = vpop.permute.xlu0 %449
      %v451 = vrot.slane %v448, 4
      %v452 = vrot.slane %v450, 4
      %v453 = vsel %vm271, %v451, %v452
      %vm454 = vcmask 744448
      %v455 = vsel %vm454, %v448, %v453
      %458 = vst [vmem:[#allocation2 + $0x24] sm:$0xcc] %v455
      %459 = vst.msk [vmem:[#allocation2 + $0x2c] sm:$0xc] %vm278, %v450
      %v460 = vld [vmem:[%s219] sm:$0x3f]
      %v462 = vcombine.high %v460, %v460
      %v464 = vunpack.c.l.s4 1983009808
      %v465 = vunpack.c.0.s8 %v464
      %v466 = vlaneseq
      %v467 = vshrl.u32 %v466, 7
      %v468 = vsub.s32 %v465, %v467
      %v469 = vrot.slane %v460, %v468
      %v471 = vunpack.c.l.s4 1983009808
      %v472 = vunpack.c.0.s8 %v471
      %v473 = vlaneseq
      %v474 = vshrl.u32 %v473, 7
      %v475 = vsub.s32 %v472, %v474
      %v476 = vrot.slane %v462, %v475
      %477 = vrot.lane.b32.xlu0 %v469, 90
      %v478 = vpop.permute.xlu0 %477
      %479 = vrot.lane.b32.xlu0 %v476, 90
      %v480 = vpop.permute.xlu0 %479
      %v481 = vrot.slane %v478, 4
      %v482 = vrot.slane %v480, 4
      %v483 = vsel %vm271, %v481, %v482
      %vm484 = vcmask 736256
      %v485 = vsel %vm484, %v478, %v483
      %488 = vst [vmem:[#allocation2 + $0x30] sm:$0x33] %v485
      %489 = vst.msk [vmem:[#allocation2 + $0x38] sm:$0x3] %vm246, %v480
      %v490 = vld [vmem:[%s1] sm:$0xf]
      %v491 = vld [vmem:[%s1 + $0x4] sm:$0xf]
      %v492 = vld [vmem:[%s1 + $0x8] sm:$0xf]
      %v493 = vld [vmem:[%s1 + $0xc] sm:$0xf]
      %v494 = vld [vmem:[%s1 + $0x10] sm:$0xf]
      %v495 = vld [vmem:[%s1 + $0x14] sm:$0xf]
      %v496 = vld [vmem:[%s1 + $0x18] sm:$0xf]
      %v497 = vld [vmem:[%s1 + $0x1c] sm:$0xf]
      %v498 = vld [vmem:[%s1 + $0x20] sm:$0xf]
      %v499 = vld [vmem:[%s1 + $0x24] sm:$0xf]
      %v500 = vld [vmem:[%s1 + $0x28] sm:$0xf]
      %v501 = vld [vmem:[%s1 + $0x2c] sm:$0xf]
      %v502 = vld [vmem:[%s1 + $0x30] sm:$0xf]
      %v503 = vld [vmem:[%s1 + $0x34] sm:$0xf]
      %v504 = vld [vmem:[%s1 + $0x38] sm:$0xf]
      %v505 = vld [vmem:[%s1 + $0x3c] sm:$0xf]
      %v506 = vld [vmem:[%s1 + $0x40] sm:$0xf]
      %v507 = vld [vmem:[%s1 + $0x44] sm:$0xf]
      %v508 = vld [vmem:[%s1 + $0x48] sm:$0xf]
      %v509 = vld [vmem:[%s1 + $0x4c] sm:$0xf]
      %v510 = vld [vmem:[%s1 + $0x50] sm:$0xf]
      %v511 = vld [vmem:[%s1 + $0x54] sm:$0xf]
      %v512 = vld [vmem:[%s1 + $0x58] sm:$0xf]
      %v513 = vld [vmem:[%s1 + $0x5c] sm:$0xf]
      %v514 = vld [vmem:[#allocation2] sm:$0xff]
      %v515 = vld [vmem:[#allocation2 + $0x8] sm:$0xf]
      %v516 = vld [vmem:[#allocation2 + $0xc] sm:$0xff]
      %v517 = vld [vmem:[#allocation2 + $0x14] sm:$0xf]
      %v518 = vld [vmem:[#allocation2 + $0x18] sm:$0xff]
      %v519 = vld [vmem:[#allocation2 + $0x20] sm:$0xf]
      %v520 = vld [vmem:[#allocation2 + $0x24] sm:$0xff]
      %v521 = vld [vmem:[#allocation2 + $0x2c] sm:$0xf]
      %v522 = vld [vmem:[#allocation2 + $0x30] sm:$0x33]
      %v523 = vld [vmem:[#allocation2 + $0x38] sm:$0x3]
      %v524 = vld [vmem:[%s2] sm:$0xff]
      %v525 = vld [vmem:[%s2 + $0x8] sm:$0xff]
      %v526 = vld [vmem:[%s2 + $0x10] sm:$0xff]
      %v527 = vld [vmem:[%s2 + $0x18] sm:$0xff]
      %v528 = vld [vmem:[%s2 + $0x20] sm:$0xff]
      %v529 = vld [vmem:[%s2 + $0x28] sm:$0xff]
      %v530 = vld [vmem:[%s2 + $0x30] sm:$0xff]
      %v531 = vld [vmem:[%s2 + $0x38] sm:$0xff]
      %v532 = vld [vmem:[%s2 + $0x40] sm:$0xff]
      %v533 = vld [vmem:[%s2 + $0x48] sm:$0xff]
      %v534 = vld [vmem:[%s2 + $0x50] sm:$0xff]
      %v535 = vld [vmem:[%s2 + $0x58] sm:$0xff]
      %v536 = vld [vmem:[%s2 + $0x60] sm:$0xff]
      %v537 = vld [vmem:[%s2 + $0x68] sm:$0xff]
      %v538 = vld [vmem:[%s2 + $0x70] sm:$0xff]
      %v539 = vld [vmem:[%s2 + $0x78] sm:$0xff]
      %v540 = vld [vmem:[%s2 + $0x80] sm:$0xff]
      %v541 = vld [vmem:[%s2 + $0x88] sm:$0xff]
      %v542 = vld [vmem:[%s2 + $0x90] sm:$0xff]
      %v543 = vld [vmem:[%s2 + $0x98] sm:$0xff]
      %v544 = vld [vmem:[%s2 + $0xa0] sm:$0xff]
      %v545 = vld [vmem:[%s2 + $0xa8] sm:$0xff]
      %v546 = vld [vmem:[%s2 + $0xb0] sm:$0xff]
      %v547 = vld [vmem:[%s2 + $0xb8] sm:$0xff]
      %549 = vset.pattern.permute.xlu0 0
      %550 = vperm.xlu0 %549, %v524
      %v551 = vpop.permute.xlu0 %550
      %554 = vset.pattern.permute.xlu0 0
      %555 = vperm.xlu0 %554, %v525
      %v556 = vpop.permute.xlu0 %555
      %559 = vset.pattern.permute.xlu0 0
      %560 = vperm.xlu0 %559, %v526
      %v561 = vpop.permute.xlu0 %560
      %564 = vset.pattern.permute.xlu0 0
      %565 = vperm.xlu0 %564, %v527
      %v566 = vpop.permute.xlu0 %565
      %569 = vset.pattern.permute.xlu0 0
      %570 = vperm.xlu0 %569, %v528
      %v571 = vpop.permute.xlu0 %570
      %574 = vset.pattern.permute.xlu0 0
      %575 = vperm.xlu0 %574, %v529
      %v576 = vpop.permute.xlu0 %575
      %579 = vset.pattern.permute.xlu0 0
      %580 = vperm.xlu0 %579, %v530
      %v581 = vpop.permute.xlu0 %580
      %584 = vset.pattern.permute.xlu0 0
      %585 = vperm.xlu0 %584, %v531
      %v586 = vpop.permute.xlu0 %585
      %589 = vset.pattern.permute.xlu0 0
      %590 = vperm.xlu0 %589, %v532
      %v591 = vpop.permute.xlu0 %590
      %594 = vset.pattern.permute.xlu0 0
      %595 = vperm.xlu0 %594, %v533
      %v596 = vpop.permute.xlu0 %595
      %599 = vset.pattern.permute.xlu0 0
      %600 = vperm.xlu0 %599, %v534
      %v601 = vpop.permute.xlu0 %600
      %604 = vset.pattern.permute.xlu0 0
      %605 = vperm.xlu0 %604, %v535
      %v606 = vpop.permute.xlu0 %605
      %609 = vset.pattern.permute.xlu0 0
      %610 = vperm.xlu0 %609, %v536
      %v611 = vpop.permute.xlu0 %610
      %614 = vset.pattern.permute.xlu0 0
      %615 = vperm.xlu0 %614, %v537
      %v616 = vpop.permute.xlu0 %615
      %619 = vset.pattern.permute.xlu0 0
      %620 = vperm.xlu0 %619, %v538
      %v621 = vpop.permute.xlu0 %620
      %624 = vset.pattern.permute.xlu0 0
      %625 = vperm.xlu0 %624, %v539
      %v626 = vpop.permute.xlu0 %625
      %629 = vset.pattern.permute.xlu0 0
      %630 = vperm.xlu0 %629, %v540
      %v631 = vpop.permute.xlu0 %630
      %634 = vset.pattern.permute.xlu0 0
      %635 = vperm.xlu0 %634, %v541
      %v636 = vpop.permute.xlu0 %635
      %639 = vset.pattern.permute.xlu0 0
      %640 = vperm.xlu0 %639, %v542
      %v641 = vpop.permute.xlu0 %640
      %644 = vset.pattern.permute.xlu0 0
      %645 = vperm.xlu0 %644, %v543
      %v646 = vpop.permute.xlu0 %645
      %649 = vset.pattern.permute.xlu0 0
      %650 = vperm.xlu0 %649, %v544
      %v651 = vpop.permute.xlu0 %650
      %654 = vset.pattern.permute.xlu0 0
      %655 = vperm.xlu0 %654, %v545
      %v656 = vpop.permute.xlu0 %655
      %659 = vset.pattern.permute.xlu0 0
      %660 = vperm.xlu0 %659, %v546
      %v661 = vpop.permute.xlu0 %660
      %664 = vset.pattern.permute.xlu0 0
      %665 = vperm.xlu0 %664, %v547
      %v666 = vpop.permute.xlu0 %665
      %v692 = vunpack.c.l.b16 %v490
      %v693 = vunpack.c.l.b16 %v491
      %v694 = vunpack.c.l.b16 %v492
      %v695 = vunpack.c.l.b16 %v493
      %v696 = vunpack.c.l.b16 %v494
      %v697 = vunpack.c.l.b16 %v495
      %v698 = vunpack.c.l.b16 %v496
      %v699 = vunpack.c.l.b16 %v497
      %v700 = vunpack.c.l.b16 %v498
      %v701 = vunpack.c.l.b16 %v499
      %v702 = vunpack.c.l.b16 %v500
      %v703 = vunpack.c.l.b16 %v501
      %v704 = vunpack.c.l.b16 %v502
      %v705 = vunpack.c.l.b16 %v503
      %v706 = vunpack.c.l.b16 %v504
      %v707 = vunpack.c.l.b16 %v505
      %v708 = vunpack.c.l.b16 %v506
      %v709 = vunpack.c.l.b16 %v507
      %v710 = vunpack.c.l.b16 %v508
      %v711 = vunpack.c.l.b16 %v509
      %v712 = vunpack.c.l.b16 %v510
      %v713 = vunpack.c.l.b16 %v511
      %v714 = vunpack.c.l.b16 %v512
      %v715 = vunpack.c.l.b16 %v513
      %v716 = vpack.c.b16 %v693, %v692
      %v717 = vpack.c.b16 %v695, %v694
      %v718 = vpack.c.b16 %v697, %v696
      %v719 = vpack.c.b16 %v699, %v698
      %v720 = vpack.c.b16 %v701, %v700
      %v721 = vpack.c.b16 %v703, %v702
      %v722 = vpack.c.b16 %v705, %v704
      %v723 = vpack.c.b16 %v707, %v706
      %v724 = vpack.c.b16 %v709, %v708
      %v725 = vpack.c.b16 %v711, %v710
      %v726 = vpack.c.b16 %v713, %v712
      %v727 = vpack.c.b16 %v715, %v714
      %v738 = vunpack.c.l.b16 %v514
      %v739 = vunpack.c.h.b16 %v514
      %v740 = vunpack.c.l.b16 %v515
      %v741 = vunpack.c.l.b16 %v516
      %v742 = vunpack.c.h.b16 %v516
      %v743 = vunpack.c.l.b16 %v517
      %v744 = vunpack.c.l.b16 %v518
      %v745 = vunpack.c.h.b16 %v518
      %v746 = vunpack.c.l.b16 %v519
      %v747 = vunpack.c.l.b16 %v520
      %v748 = vunpack.c.h.b16 %v520
      %v749 = vunpack.c.l.b16 %v521
      %v750 = vunpack.c.l.b16 %v522
      %v751 = vunpack.c.h.b16 %v522
      %v752 = vunpack.c.l.b16 %v523
      %v753 = vpack.c.b16 %v741, %v738
      %v754 = vpack.c.b16 %v742, %v739
      %v755 = vpack.c.b16 %v743, %v740
      %v756 = vpack.c.b16 %v747, %v744
      %v757 = vpack.c.b16 %v748, %v745
      %v758 = vpack.c.b16 %v749, %v746
      %v759 = vpack.c.b16 %v750, %v750
      %v760 = vpack.c.b16 %v751, %v751
      %v761 = vpack.c.b16 %v752, %v752
      %vm768 = vcmask 293888
      %v770 = vsel %vm768, %v716, 0
      %v773 = vsel %vm768, %v717, 0
      %v776 = vsel %vm768, %v718, 0
      %v779 = vsel %vm768, %v719, 0
      %v782 = vsel %vm768, %v720, 0
      %v785 = vsel %vm768, %v721, 0
      %v788 = vsel %vm768, %v722, 0
      %v791 = vsel %vm768, %v723, 0
      %v794 = vsel %vm768, %v724, 0
      %v797 = vsel %vm768, %v725, 0
      %v800 = vsel %vm768, %v726, 0
      %v803 = vsel %vm768, %v727, 0
      %vm805 = vcmask 1041408
      %v807 = vsel %vm805, %v759, 0
      %v810 = vsel %vm805, %v760, 0
      %v813 = vsel %vm805, %v761, 0
      %815 = vmatprep.subr.bf16.mxu0 %v754
      %816 = vmatpush1.bf16.msra.mxu0 %v753
      %817 = vmatprep.subr.bf16.mxu0 %v757
      %818 = vmatpush1.bf16.msra.mxu0 %v756
      %819 = vmatprep.subr.bf16.mxu0 %v810
      %820 = vmatpush1.bf16.msra.mxu0 %v807
      %821 = vmatprep.subr.bf16.mxu0 0
      %822 = vmatpush1.bf16.msra.mxu0 0
      %823 = vmatprep.subr.bf16.mxu0 0
      %824 = vmatpush1.bf16.msra.mxu0 0
      %825 = vmatprep.subr.bf16.mxu0 0
      %826 = vmatpush1.bf16.msra.mxu0 0
      %827 = vmatprep.subr.bf16.mxu0 0
      %828 = vmatpush1.bf16.msra.mxu0 0
      %829 = vmatprep.subr.bf16.mxu0 0
      %830 = vmatpush1.bf16.msra.mxu0 0
      %831 = vmatprep.subr.bf16.mxu0 0
      %832 = vmatpush1.bf16.msra.mxu0 0
      %833 = vmatprep.subr.bf16.mxu0 0
      %834 = vmatpush1.bf16.msra.mxu0 0
      %835 = vmatprep.subr.bf16.mxu0 0
      %836 = vmatpush1.bf16.msra.mxu0 0
      %837 = vmatprep.subr.bf16.mxu0 0
      %838 = vmatpush1.bf16.msra.mxu0 0
      %839 = vmatprep.subr.bf16.mxu0 0
      %840 = vmatpush1.bf16.msra.mxu0 0
      %841 = vmatprep.subr.bf16.mxu0 0
      %842 = vmatpush1.bf16.msra.mxu0 0
      %843 = vmatprep.subr.bf16.mxu0 0
      %844 = vmatpush1.bf16.msra.mxu0 0
      %845 = vmatprep.subr.bf16.mxu0 0
      %846 = vmatpush1.bf16.msra.mxu0 0
      %847 = vmatprep.mubr.bf16.mxu0 0
      %848 = vmatmul.mubr.bf16.gmra.mrb[0].mxu0 %v770
      %v849 = vpop.f32.mrb[0].mxu0
      %v850 = vadd.f32 %v551, %v849
      %v851 = vpop.f32.mrb[0].mxu0
      %v852 = vadd.f32 %v551, %v851
      %v853 = vpop.f32.mrb[0].mxu0
      %v854 = vadd.f32 %v556, %v853
      %v855 = vpop.f32.mrb[0].mxu0
      %v856 = vadd.f32 %v556, %v855
      %857 = vmatprep.mubr.bf16.mxu0 0
      %858 = vmatmul.mubr.bf16.gmra.mrb[0].mxu0 %v773
      %v859 = vpop.f32.mrb[0].mxu0
      %v860 = vadd.f32 %v561, %v859
      %v861 = vpop.f32.mrb[0].mxu0
      %v862 = vadd.f32 %v561, %v861
      %v863 = vpop.f32.mrb[0].mxu0
      %v864 = vadd.f32 %v566, %v863
      %v865 = vpop.f32.mrb[0].mxu0
      %v866 = vadd.f32 %v566, %v865
      %867 = vmatprep.mubr.bf16.mxu0 0
      %868 = vmatmul.mubr.bf16.gmra.mrb[0].mxu0 %v776
      %v869 = vpop.f32.mrb[0].mxu0
      %v870 = vadd.f32 %v571, %v869
      %v871 = vpop.f32.mrb[0].mxu0
      %v872 = vadd.f32 %v571, %v871
      %v873 = vpop.f32.mrb[0].mxu0
      %v874 = vadd.f32 %v576, %v873
      %v875 = vpop.f32.mrb[0].mxu0
      %v876 = vadd.f32 %v576, %v875
      %877 = vmatprep.mubr.bf16.mxu0 0
      %878 = vmatmul.mubr.bf16.gmra.mrb[0].mxu0 %v779
      %v879 = vpop.f32.mrb[0].mxu0
      %v880 = vadd.f32 %v581, %v879
      %v881 = vpop.f32.mrb[0].mxu0
      %v882 = vadd.f32 %v581, %v881
      %v883 = vpop.f32.mrb[0].mxu0
      %v884 = vadd.f32 %v586, %v883
      %v885 = vpop.f32.mrb[0].mxu0
      %v886 = vadd.f32 %v586, %v885
      %887 = vmatprep.mubr.bf16.mxu0 0
      %888 = vmatmul.mubr.bf16.gmra.mrb[0].mxu0 %v782
      %v889 = vpop.f32.mrb[0].mxu0
      %v890 = vadd.f32 %v591, %v889
      %v891 = vpop.f32.mrb[0].mxu0
      %v892 = vadd.f32 %v591, %v891
      %v893 = vpop.f32.mrb[0].mxu0
      %v894 = vadd.f32 %v596, %v893
      %v895 = vpop.f32.mrb[0].mxu0
      %v896 = vadd.f32 %v596, %v895
      %897 = vmatprep.mubr.bf16.mxu0 0
      %898 = vmatmul.mubr.bf16.gmra.mrb[0].mxu0 %v785
      %v899 = vpop.f32.mrb[0].mxu0
      %v900 = vadd.f32 %v601, %v899
      %v901 = vpop.f32.mrb[0].mxu0
      %v902 = vadd.f32 %v601, %v901
      %v903 = vpop.f32.mrb[0].mxu0
      %v904 = vadd.f32 %v606, %v903
      %v905 = vpop.f32.mrb[0].mxu0
      %v906 = vadd.f32 %v606, %v905
      %907 = vmatprep.mubr.bf16.mxu0 0
      %908 = vmatmul.mubr.bf16.gmra.mrb[0].mxu0 %v788
      %v909 = vpop.f32.mrb[0].mxu0
      %v910 = vadd.f32 %v611, %v909
      %v911 = vpop.f32.mrb[0].mxu0
      %v912 = vadd.f32 %v611, %v911
      %v913 = vpop.f32.mrb[0].mxu0
      %v914 = vadd.f32 %v616, %v913
      %v915 = vpop.f32.mrb[0].mxu0
      %v916 = vadd.f32 %v616, %v915
      %917 = vmatprep.mubr.bf16.mxu0 0
      %918 = vmatmul.mubr.bf16.gmra.mrb[0].mxu0 %v791
      %v919 = vpop.f32.mrb[0].mxu0
      %v920 = vadd.f32 %v621, %v919
      %v921 = vpop.f32.mrb[0].mxu0
      %v922 = vadd.f32 %v621, %v921
      %v923 = vpop.f32.mrb[0].mxu0
      %v924 = vadd.f32 %v626, %v923
      %v925 = vpop.f32.mrb[0].mxu0
      %v926 = vadd.f32 %v626, %v925
      %927 = vmatprep.mubr.bf16.mxu0 0
      %928 = vmatmul.mubr.bf16.gmra.mrb[0].mxu0 %v794
      %v929 = vpop.f32.mrb[0].mxu0
      %v930 = vadd.f32 %v631, %v929
      %v931 = vpop.f32.mrb[0].mxu0
      %v932 = vadd.f32 %v631, %v931
      %v933 = vpop.f32.mrb[0].mxu0
      %v934 = vadd.f32 %v636, %v933
      %v935 = vpop.f32.mrb[0].mxu0
      %v936 = vadd.f32 %v636, %v935
      %937 = vmatprep.mubr.bf16.mxu0 0
      %938 = vmatmul.mubr.bf16.gmra.mrb[0].mxu0 %v797
      %v939 = vpop.f32.mrb[0].mxu0
      %v940 = vadd.f32 %v641, %v939
      %v941 = vpop.f32.mrb[0].mxu0
      %v942 = vadd.f32 %v641, %v941
      %v943 = vpop.f32.mrb[0].mxu0
      %v944 = vadd.f32 %v646, %v943
      %v945 = vpop.f32.mrb[0].mxu0
      %v946 = vadd.f32 %v646, %v945
      %947 = vmatprep.mubr.bf16.mxu0 0
      %948 = vmatmul.mubr.bf16.gmra.mrb[0].mxu0 %v800
      %v949 = vpop.f32.mrb[0].mxu0
      %v950 = vadd.f32 %v651, %v949
      %v951 = vpop.f32.mrb[0].mxu0
      %v952 = vadd.f32 %v651, %v951
      %v953 = vpop.f32.mrb[0].mxu0
      %v954 = vadd.f32 %v656, %v953
      %v955 = vpop.f32.mrb[0].mxu0
      %v956 = vadd.f32 %v656, %v955
      %957 = vmatprep.mubr.bf16.mxu0 0
      %958 = vmatmul.mubr.bf16.gmra.mrb[0].mxu0 %v803
      %v959 = vpop.f32.mrb[0].mxu0
      %v960 = vadd.f32 %v661, %v959
      %v961 = vpop.f32.mrb[0].mxu0
      %v962 = vadd.f32 %v661, %v961
      %v963 = vpop.f32.mrb[0].mxu0
      %v964 = vadd.f32 %v666, %v963
      %v965 = vpop.f32.mrb[0].mxu0
      %v966 = vadd.f32 %v666, %v965
      %967 = vdwg.mxu0
      %968 = vmatprep.subr.bf16.mxu0 0
      %969 = vmatpush1.bf16.msra.mxu0 %v755
      %970 = vmatprep.subr.bf16.mxu0 0
      %971 = vmatpush1.bf16.msra.mxu0 %v758
      %972 = vmatprep.subr.bf16.mxu0 0
      %973 = vmatpush1.bf16.msra.mxu0 %v813
      %974 = vmatprep.subr.bf16.mxu0 0
      %975 = vmatpush1.bf16.msra.mxu0 0
      %976 = vmatprep.subr.bf16.mxu0 0
      %977 = vmatpush1.bf16.msra.mxu0 0
      %978 = vmatprep.subr.bf16.mxu0 0
      %979 = vmatpush1.bf16.msra.mxu0 0
      %980 = vmatprep.subr.bf16.mxu0 0
      %981 = vmatpush1.bf16.msra.mxu0 0
      %982 = vmatprep.subr.bf16.mxu0 0
      %983 = vmatpush1.bf16.msra.mxu0 0
      %984 = vmatprep.subr.bf16.mxu0 0
      %985 = vmatpush1.bf16.msra.mxu0 0
      %986 = vmatprep.subr.bf16.mxu0 0
      %987 = vmatpush1.bf16.msra.mxu0 0
      %988 = vmatprep.subr.bf16.mxu0 0
      %989 = vmatpush1.bf16.msra.mxu0 0
      %990 = vmatprep.subr.bf16.mxu0 0
      %991 = vmatpush1.bf16.msra.mxu0 0
      %992 = vmatprep.subr.bf16.mxu0 0
      %993 = vmatpush1.bf16.msra.mxu0 0
      %994 = vmatprep.subr.bf16.mxu0 0
      %995 = vmatpush1.bf16.msra.mxu0 0
      %996 = vmatprep.subr.bf16.mxu0 0
      %997 = vmatpush1.bf16.msra.mxu0 0
      %998 = vmatprep.subr.bf16.mxu0 0
      %999 = vmatpush1.bf16.msra.mxu0 0
      %1000 = vmatprep.mubr.bf16.mxu0 0
      %1001 = vmatmul.mubr.bf16.gmra.mrb[0].mxu0 %v770
      %v1002 = vpop.f32.mrb[0].mxu0
      %v1003 = vadd.f32 %v551, %v1002
      %v1004 = vpop.f32.mrb[0].mxu0
      %v1005 = vpop.f32.mrb[0].mxu0
      %v1006 = vadd.f32 %v556, %v1005
      %v1007 = vpop.f32.mrb[0].mxu0
      %1008 = vmatprep.mubr.bf16.mxu0 0
      %1009 = vmatmul.mubr.bf16.gmra.mrb[0].mxu0 %v773
      %v1010 = vpop.f32.mrb[0].mxu0
      %v1011 = vadd.f32 %v561, %v1010
      %v1012 = vpop.f32.mrb[0].mxu0
      %v1013 = vpop.f32.mrb[0].mxu0
      %v1014 = vadd.f32 %v566, %v1013
      %v1015 = vpop.f32.mrb[0].mxu0
      %1016 = vmatprep.mubr.bf16.mxu0 0
      %1017 = vmatmul.mubr.bf16.gmra.mrb[0].mxu0 %v776
      %v1018 = vpop.f32.mrb[0].mxu0
      %v1019 = vadd.f32 %v571, %v1018
      %v1020 = vpop.f32.mrb[0].mxu0
      %v1021 = vpop.f32.mrb[0].mxu0
      %v1022 = vadd.f32 %v576, %v1021
      %v1023 = vpop.f32.mrb[0].mxu0
      %1024 = vmatprep.mubr.bf16.mxu0 0
      %1025 = vmatmul.mubr.bf16.gmra.mrb[0].mxu0 %v779
      %v1026 = vpop.f32.mrb[0].mxu0
      %v1027 = vadd.f32 %v581, %v1026
      %v1028 = vpop.f32.mrb[0].mxu0
      %v1029 = vpop.f32.mrb[0].mxu0
      %v1030 = vadd.f32 %v586, %v1029
      %v1031 = vpop.f32.mrb[0].mxu0
      %1032 = vmatprep.mubr.bf16.mxu0 0
      %1033 = vmatmul.mubr.bf16.gmra.mrb[0].mxu0 %v782
      %v1034 = vpop.f32.mrb[0].mxu0
      %v1035 = vadd.f32 %v591, %v1034
      %v1036 = vpop.f32.mrb[0].mxu0
      %v1037 = vpop.f32.mrb[0].mxu0
      %v1038 = vadd.f32 %v596, %v1037
      %v1039 = vpop.f32.mrb[0].mxu0
      %1040 = vmatprep.mubr.bf16.mxu0 0
      %1041 = vmatmul.mubr.bf16.gmra.mrb[0].mxu0 %v785
      %v1042 = vpop.f32.mrb[0].mxu0
      %v1043 = vadd.f32 %v601, %v1042
      %v1044 = vpop.f32.mrb[0].mxu0
      %v1045 = vpop.f32.mrb[0].mxu0
      %v1046 = vadd.f32 %v606, %v1045
      %v1047 = vpop.f32.mrb[0].mxu0
      %1048 = vmatprep.mubr.bf16.mxu0 0
      %1049 = vmatmul.mubr.bf16.gmra.mrb[0].mxu0 %v788
      %v1050 = vpop.f32.mrb[0].mxu0
      %v1051 = vadd.f32 %v611, %v1050
      %v1052 = vpop.f32.mrb[0].mxu0
      %v1053 = vpop.f32.mrb[0].mxu0
      %v1054 = vadd.f32 %v616, %v1053
      %v1055 = vpop.f32.mrb[0].mxu0
      %1056 = vmatprep.mubr.bf16.mxu0 0
      %1057 = vmatmul.mubr.bf16.gmra.mrb[0].mxu0 %v791
      %v1058 = vpop.f32.mrb[0].mxu0
      %v1059 = vadd.f32 %v621, %v1058
      %v1060 = vpop.f32.mrb[0].mxu0
      %v1061 = vpop.f32.mrb[0].mxu0
      %v1062 = vadd.f32 %v626, %v1061
      %v1063 = vpop.f32.mrb[0].mxu0
      %1064 = vmatprep.mubr.bf16.mxu0 0
      %1065 = vmatmul.mubr.bf16.gmra.mrb[0].mxu0 %v794
      %v1066 = vpop.f32.mrb[0].mxu0
      %v1067 = vadd.f32 %v631, %v1066
      %v1068 = vpop.f32.mrb[0].mxu0
      %v1069 = vpop.f32.mrb[0].mxu0
      %v1070 = vadd.f32 %v636, %v1069
      %v1071 = vpop.f32.mrb[0].mxu0
      %1072 = vmatprep.mubr.bf16.mxu0 0
      %1073 = vmatmul.mubr.bf16.gmra.mrb[0].mxu0 %v797
      %v1074 = vpop.f32.mrb[0].mxu0
      %v1075 = vadd.f32 %v641, %v1074
      %v1076 = vpop.f32.mrb[0].mxu0
      %v1077 = vpop.f32.mrb[0].mxu0
      %v1078 = vadd.f32 %v646, %v1077
      %v1079 = vpop.f32.mrb[0].mxu0
      %1080 = vmatprep.mubr.bf16.mxu0 0
      %1081 = vmatmul.mubr.bf16.gmra.mrb[0].mxu0 %v800
      %v1082 = vpop.f32.mrb[0].mxu0
      %v1083 = vadd.f32 %v651, %v1082
      %v1084 = vpop.f32.mrb[0].mxu0
      %v1085 = vpop.f32.mrb[0].mxu0
      %v1086 = vadd.f32 %v656, %v1085
      %v1087 = vpop.f32.mrb[0].mxu0
      %1088 = vmatprep.mubr.bf16.mxu0 0
      %1089 = vmatmul.mubr.bf16.gmra.mrb[0].mxu0 %v803
      %v1090 = vpop.f32.mrb[0].mxu0
      %v1091 = vadd.f32 %v661, %v1090
      %v1092 = vpop.f32.mrb[0].mxu0
      %v1093 = vpop.f32.mrb[0].mxu0
      %v1094 = vadd.f32 %v666, %v1093
      %v1095 = vpop.f32.mrb[0].mxu0
      %1096 = vdwg.mxu0
      %v1097 = vmax.f32 %v850, 0.0
      %v1098 = vmax.f32 %v852, 0.0
      %v1099 = vmax.f32 %v1003, 0.0
      %v1100 = vmax.f32 %v854, 0.0
      %v1101 = vmax.f32 %v856, 0.0
      %v1102 = vmax.f32 %v1006, 0.0
      %v1103 = vmax.f32 %v860, 0.0
      %v1104 = vmax.f32 %v862, 0.0
      %v1105 = vmax.f32 %v1011, 0.0
      %v1106 = vmax.f32 %v864, 0.0
      %v1107 = vmax.f32 %v866, 0.0
      %v1108 = vmax.f32 %v1014, 0.0
      %v1109 = vmax.f32 %v870, 0.0
      %v1110 = vmax.f32 %v872, 0.0
      %v1111 = vmax.f32 %v1019, 0.0
      %v1112 = vmax.f32 %v874, 0.0
      %v1113 = vmax.f32 %v876, 0.0
      %v1114 = vmax.f32 %v1022, 0.0
      %v1115 = vmax.f32 %v880, 0.0
      %v1116 = vmax.f32 %v882, 0.0
      %v1117 = vmax.f32 %v1027, 0.0
      %v1118 = vmax.f32 %v884, 0.0
      %v1119 = vmax.f32 %v886, 0.0
      %v1120 = vmax.f32 %v1030, 0.0
      %v1121 = vmax.f32 %v890, 0.0
      %v1122 = vmax.f32 %v892, 0.0
      %v1123 = vmax.f32 %v1035, 0.0
      %v1124 = vmax.f32 %v894, 0.0
      %v1125 = vmax.f32 %v896, 0.0
      %v1126 = vmax.f32 %v1038, 0.0
      %v1127 = vmax.f32 %v900, 0.0
      %v1128 = vmax.f32 %v902, 0.0
      %v1129 = vmax.f32 %v1043, 0.0
      %v1130 = vmax.f32 %v904, 0.0
      %v1131 = vmax.f32 %v906, 0.0
      %v1132 = vmax.f32 %v1046, 0.0
      %v1133 = vmax.f32 %v910, 0.0
      %v1134 = vmax.f32 %v912, 0.0
      %v1135 = vmax.f32 %v1051, 0.0
      %v1136 = vmax.f32 %v914, 0.0
      %v1137 = vmax.f32 %v916, 0.0
      %v1138 = vmax.f32 %v1054, 0.0
      %v1139 = vmax.f32 %v920, 0.0
      %v1140 = vmax.f32 %v922, 0.0
      %v1141 = vmax.f32 %v1059, 0.0
      %v1142 = vmax.f32 %v924, 0.0
      %v1143 = vmax.f32 %v926, 0.0
      %v1144 = vmax.f32 %v1062, 0.0
      %v1145 = vmax.f32 %v930, 0.0
      %v1146 = vmax.f32 %v932, 0.0
      %v1147 = vmax.f32 %v1067, 0.0
      %v1148 = vmax.f32 %v934, 0.0
      %v1149 = vmax.f32 %v936, 0.0
      %v1150 = vmax.f32 %v1070, 0.0
      %v1151 = vmax.f32 %v940, 0.0
      %v1152 = vmax.f32 %v942, 0.0
      %v1153 = vmax.f32 %v1075, 0.0
      %v1154 = vmax.f32 %v944, 0.0
      %v1155 = vmax.f32 %v946, 0.0
      %v1156 = vmax.f32 %v1078, 0.0
      %v1157 = vmax.f32 %v950, 0.0
      %v1158 = vmax.f32 %v952, 0.0
      %v1159 = vmax.f32 %v1083, 0.0
      %v1160 = vmax.f32 %v954, 0.0
      %v1161 = vmax.f32 %v956, 0.0
      %v1162 = vmax.f32 %v1086, 0.0
      %v1163 = vmax.f32 %v960, 0.0
      %v1164 = vmax.f32 %v962, 0.0
      %v1165 = vmax.f32 %v1091, 0.0
      %v1166 = vmax.f32 %v964, 0.0
      %v1167 = vmax.f32 %v966, 0.0
      %v1168 = vmax.f32 %v1094, 0.0
      %v1169 = vld [vmem:[%s3] sm:$0xff]
      %v1170 = vpack.c.bf16 %v1100, %v1097
      %v1171 = vpack.c.bf16 %v1101, %v1098
      %v1172 = vpack.c.bf16 %v1102, %v1099
      %v1173 = vpack.c.bf16 %v1106, %v1103
      %v1174 = vpack.c.bf16 %v1107, %v1104
      %v1175 = vpack.c.bf16 %v1108, %v1105
      %v1176 = vpack.c.bf16 %v1112, %v1109
      %v1177 = vpack.c.bf16 %v1113, %v1110
      %v1178 = vpack.c.bf16 %v1114, %v1111
      %v1179 = vpack.c.bf16 %v1118, %v1115
      %v1180 = vpack.c.bf16 %v1119, %v1116
      %v1181 = vpack.c.bf16 %v1120, %v1117
      %v1182 = vpack.c.bf16 %v1124, %v1121
      %v1183 = vpack.c.bf16 %v1125, %v1122
      %v1184 = vpack.c.bf16 %v1126, %v1123
      %v1185 = vpack.c.bf16 %v1130, %v1127
      %v1186 = vpack.c.bf16 %v1131, %v1128
      %v1187 = vpack.c.bf16 %v1132, %v1129
      %v1188 = vpack.c.bf16 %v1136, %v1133
      %v1189 = vpack.c.bf16 %v1137, %v1134
      %v1190 = vpack.c.bf16 %v1138, %v1135
      %v1191 = vpack.c.bf16 %v1142, %v1139
      %v1192 = vpack.c.bf16 %v1143, %v1140
      %v1193 = vpack.c.bf16 %v1144, %v1141
      %v1194 = vpack.c.bf16 %v1148, %v1145
      %v1195 = vpack.c.bf16 %v1149, %v1146
      %v1196 = vpack.c.bf16 %v1150, %v1147
      %v1197 = vpack.c.bf16 %v1154, %v1151
      %v1198 = vpack.c.bf16 %v1155, %v1152
      %v1199 = vpack.c.bf16 %v1156, %v1153
      %v1200 = vpack.c.bf16 %v1160, %v1157
      %v1201 = vpack.c.bf16 %v1161, %v1158
      %v1202 = vpack.c.bf16 %v1162, %v1159
      %v1203 = vpack.c.bf16 %v1166, %v1163
      %v1204 = vpack.c.bf16 %v1167, %v1164
      %v1205 = vpack.c.bf16 %v1168, %v1165
      %v1206 = vld [vmem:[%s4] sm:$0xff]
      %1208 = vset.pattern.permute.xlu0 0
      %1209 = vperm.xlu0 %1208, %v1206
      %v1210 = vpop.permute.xlu0 %1209
      %v1213 = vunpack.c.l.b16 %v1169
      %v1214 = vunpack.c.h.b16 %v1169
      %v1215 = vpack.c.b16 %v1213, %v1213
      %v1216 = vpack.c.b16 %v1214, %v1214
      %vm1218 = vcmask 523264
      %v1220 = vsel %vm1218, %v1216, 0
      %1222 = vmatprep.subr.bf16.mxu0 %v1171
      %1223 = vmatpush1.bf16.msra.mxu0 %v1170
      %1224 = vmatprep.subr.bf16.mxu0 %v1174
      %1225 = vmatpush1.bf16.msra.mxu0 %v1173
      %1226 = vmatprep.subr.bf16.mxu0 %v1177
      %1227 = vmatpush1.bf16.msra.mxu0 %v1176
      %1228 = vmatprep.subr.bf16.mxu0 %v1180
      %1229 = vmatpush1.bf16.msra.mxu0 %v1179
      %1230 = vmatprep.subr.bf16.mxu0 %v1183
      %1231 = vmatpush1.bf16.msra.mxu0 %v1182
      %1232 = vmatprep.subr.bf16.mxu0 %v1186
      %1233 = vmatpush1.bf16.msra.mxu0 %v1185
      %1234 = vmatprep.subr.bf16.mxu0 %v1189
      %1235 = vmatpush1.bf16.msra.mxu0 %v1188
      %1236 = vmatprep.subr.bf16.mxu0 %v1192
      %1237 = vmatpush1.bf16.msra.mxu0 %v1191
      %1238 = vmatprep.subr.bf16.mxu0 %v1195
      %1239 = vmatpush1.bf16.msra.mxu0 %v1194
      %1240 = vmatprep.subr.bf16.mxu0 %v1198
      %1241 = vmatpush1.bf16.msra.mxu0 %v1197
      %1242 = vmatprep.subr.bf16.mxu0 %v1201
      %1243 = vmatpush1.bf16.msra.mxu0 %v1200
      %1244 = vmatprep.subr.bf16.mxu0 %v1204
      %1245 = vmatpush1.bf16.msra.mxu0 %v1203
      %1246 = vmatprep.subr.bf16.mxu0 0
      %1247 = vmatpush1.bf16.msra.mxu0 0
      %1248 = vmatprep.subr.bf16.mxu0 0
      %1249 = vmatpush1.bf16.msra.mxu0 0
      %1250 = vmatprep.subr.bf16.mxu0 0
      %1251 = vmatpush1.bf16.msra.mxu0 0
      %1252 = vmatprep.subr.bf16.mxu0 0
      %1253 = vmatpush1.bf16.msra.mxu0 0
      %1254 = vmatprep.mubr.bf16.mxu0 %v1220
      %1255 = vmatmul.mubr.bf16.gmra.mrb[0].mxu0 %v1215
      %v1256 = vpop.f32.mrb[0].mxu0
      %v1257 = vadd.f32 %v1210, %v1256
      %v1258 = vpop.f32.mrb[0].mxu0
      %v1259 = vadd.f32 %v1210, %v1258
      %v1260 = vpop.f32.mrb[0].mxu0
      %v1261 = vpop.f32.mrb[0].mxu0
      %1262 = vdwg.mxu0
      %1263 = vmatprep.subr.bf16.mxu0 0
      %1264 = vmatpush1.bf16.msra.mxu0 %v1172
      %1265 = vmatprep.subr.bf16.mxu0 0
      %1266 = vmatpush1.bf16.msra.mxu0 %v1175
      %1267 = vmatprep.subr.bf16.mxu0 0
      %1268 = vmatpush1.bf16.msra.mxu0 %v1178
      %1269 = vmatprep.subr.bf16.mxu0 0
      %1270 = vmatpush1.bf16.msra.mxu0 %v1181
      %1271 = vmatprep.subr.bf16.mxu0 0
      %1272 = vmatpush1.bf16.msra.mxu0 %v1184
      %1273 = vmatprep.subr.bf16.mxu0 0
      %1274 = vmatpush1.bf16.msra.mxu0 %v1187
      %1275 = vmatprep.subr.bf16.mxu0 0
      %1276 = vmatpush1.bf16.msra.mxu0 %v1190
      %1277 = vmatprep.subr.bf16.mxu0 0
      %1278 = vmatpush1.bf16.msra.mxu0 %v1193
      %1279 = vmatprep.subr.bf16.mxu0 0
      %1280 = vmatpush1.bf16.msra.mxu0 %v1196
      %1281 = vmatprep.subr.bf16.mxu0 0
      %1282 = vmatpush1.bf16.msra.mxu0 %v1199
      %1283 = vmatprep.subr.bf16.mxu0 0
      %1284 = vmatpush1.bf16.msra.mxu0 %v1202
      %1285 = vmatprep.subr.bf16.mxu0 0
      %1286 = vmatpush1.bf16.msra.mxu0 %v1205
      %1287 = vmatprep.subr.bf16.mxu0 0
      %1288 = vmatpush1.bf16.msra.mxu0 0
      %1289 = vmatprep.subr.bf16.mxu0 0
      %1290 = vmatpush1.bf16.msra.mxu0 0
      %1291 = vmatprep.subr.bf16.mxu0 0
      %1292 = vmatpush1.bf16.msra.mxu0 0
      %1293 = vmatprep.subr.bf16.mxu0 0
      %1294 = vmatpush1.bf16.msra.mxu0 0
      %1295 = vmatprep.mubr.bf16.mxu0 %v1220
      %1296 = vmatmul.mubr.bf16.gmra.mrb[0].mxu0 %v1215
      %v1297 = vpop.f32.mrb[0].mxu0
      %v1298 = vadd.f32 %v1210, %v1297
      %v1299 = vpop.f32.mrb[0].mxu0
      %v1300 = vpop.f32.mrb[0].mxu0
      %v1301 = vpop.f32.mrb[0].mxu0
      %1302 = vdwg.mxu0
      %1303 = vst [vmem:[%s224] sm:$0xff] %v1257
      %1304 = vst [vmem:[%s224 + $0x8] sm:$0xff] %v1259
      %vm1305 = vcmask 261120
      %1306 = vst.msk [vmem:[%s224 + $0x10] sm:$0xff] %vm1305, %v1298
      %p1307 = scmp.lt.s32.totalorder %s16, 1
      %s1308 = scalar_select %p1307, %s16, 1
      %s1309 = smul.addr %s1308, 3
      %s1310 = smul.addr %s1309, 8
      %s1311 = scalar_lea.vmem %s5, %s1310
      // Predicated region
      $region41: #{naive_rpn_head_forward.1} parent=39 // pred_check
        %p1312 = pneg %p144
      $region42: #{naive_rpn_head_forward.1} parent=39 // pred_check_branch
        %1314 = sbr.rel (%p1312) target = $region44
      $region43: #{naive_rpn_head_forward.1} parent=39 // pred_region
        _
      $region44: #{naive_rpn_head_forward.1} parent=39 // pred_fallthru
        _
    $region40: #{naive_rpn_head_forward.1} parent=5 // pred_fallthru
      _
    %p1315 = scmp.le.s32.totalorder 2, %s11
    // Predicated region
    $region45: #{naive_rpn_head_forward.1} parent=5 // pred_check
      %p1316 = pneg %p1315
    $region46: #{naive_rpn_head_forward.1} parent=5 // pred_check_branch
      %1318 = sbr.rel (%p1316) target = $region48
    $region47: #{naive_rpn_head_forward.1} parent=5 // pred_region
      %s1319 = ssub.s32 %s11, 2
      // Predicated region
      $region49: #{naive_rpn_head_forward.1} parent=47 // pred_check
        %p1320 = pneg %p150
      $region50: #{naive_rpn_head_forward.1} parent=47 // pred_check_branch
        %1322 = sbr.rel (%p1320) target = $region52
      $region51: #{naive_rpn_head_forward.1} parent=47 // pred_region
        %p1323 = scmp.lt.s32.totalorder %s17, 1
        %s1324 = scalar_select %p1323, %s17, 1
        %s1325 = smul.addr %s1324, 3
        %s1326 = smul.addr %s1325, 8
        %s1327 = scalar_lea.vmem %s5, %s1326
      $region52: #{naive_rpn_head_forward.1} parent=47 // pred_fallthru
        _
    $region48: #{naive_rpn_head_forward.1} parent=5 // pred_fallthru
      _
  $region6: #{naive_rpn_head_forward.1} parent=0 // loop_footer
    %s15 = sadd.s32 1, %s11
  $region7: #{naive_rpn_head_forward.1} parent=0 // loop_footer_branch
    %10 = sbr.rel target = $region3
  $region8: #{naive_rpn_head_forward.1} parent=0 // loop_exit
    _

</llo_original>
